<compile_context>
chip_gen: v5e
topology: v5e:2x2
jax: 0.10.0
libtpu: 0.0.40
codegen_flags: <defaults>
</compile_context>

<pallas_src>
import functools

import jax
import jax.numpy as jnp
from jax.experimental import pallas as pl
from jax.experimental.pallas import tpu as pltpu

IGNORE_INDEX = -100


def _ce_partial_kernel(logits_ref, targets_ref, sum_ref, cnt_ref, *, num_rows):
    """Per-block partial cross-entropy for one [tile_m, C] block.

    logits_ref : [TM, C] float block (VMEM, native dtype)
    targets_ref: [TM, 1] int32 block (VMEM)
    sum_ref    : [1, 8, 1] f32 -> per-block sum of per-row losses (broadcast)
    cnt_ref    : [1, 8, 1] f32 -> per-block count of non-ignored rows
    """
    x = logits_ref[...]                                    # [TM, C] native dtype
    tgt = targets_ref[...]                                 # [TM, 1] int32
    tm, c = x.shape

    # Row-local max (order comparison only -> exact in any dtype).
    row_max = jnp.max(x, axis=-1, keepdims=True)           # [TM, 1]

    # Target logit via a one-hot select against a [1, C] class iota (broadcast
    # compare; no dynamic lane gather on TPU).  Exactly one (or zero) match per
    # row, so the native-dtype sum is exact.
    col = jax.lax.broadcasted_iota(jnp.int32, (1, c), 1)   # [1, C]
    onehot = col == tgt                                    # [TM, C] (broadcast)
    tgt_logit = jnp.sum(jnp.where(onehot, x, 0), axis=-1, keepdims=True)

    # Numerically stable softmax denominator; single f32 pass over [TM, C].
    shifted = x.astype(jnp.float32) - row_max.astype(jnp.float32)
    sum_exp = jnp.sum(jnp.exp(shifted), axis=-1, keepdims=True)   # [TM, 1]

    per_row = (jnp.log(sum_exp) + row_max.astype(jnp.float32)
               - tgt_logit.astype(jnp.float32))            # [TM, 1]

    # Mask ignore_index rows and the out-of-range tail rows of the last block
    # (their logits/targets are garbage and may be NaN/Inf) BEFORE reducing.
    row = jax.lax.broadcasted_iota(jnp.int32, (tm, 1), 0)
    in_range = (pl.program_id(0) * tm + row) < num_rows
    valid = jnp.logical_and(tgt != IGNORE_INDEX, in_range)

    block_sum = jnp.sum(jnp.where(valid, per_row, 0.0), axis=0, keepdims=True)
    block_cnt = jnp.sum(jnp.where(valid, 1.0, 0.0), axis=0, keepdims=True)

    # Broadcast the (1, 1) partials into the (1, 8, 1) tile-aligned output.
    sum_ref[...] = jnp.broadcast_to(block_sum[None], sum_ref.shape)
    cnt_ref[...] = jnp.broadcast_to(block_cnt[None], cnt_ref.shape)


def _vmem_limit_bytes():
    """Per-generation scoped-VMEM request (headroom below physical capacity)."""
    kind = ""
    try:
        kind = jax.devices()[0].device_kind.lower()
    except Exception:  # pragma: no cover - defensive (e.g. no devices yet)
        pass
    compact = kind.replace(" ", "")
    if "v7" in compact or "tpu7" in compact:
        return 48 * 1024 * 1024        # 64 MiB physical per TC on v7x
    return 96 * 1024 * 1024            # 128 MiB physical on v5e / v6e


def _pick_tile_m(m, c, dtype, vmem_limit):
    """Row tile sized by a bytes-per-DMA target under a real VMEM budget."""
    itemsize = jnp.dtype(dtype).itemsize
    # Sublane packing granularity: 8 (32-bit), 16 (16-bit), 32 (8-bit).
    gran = 8 if itemsize >= 4 else (16 if itemsize == 2 else 32)
    row_in_bytes = max(c * itemsize, 1)

    # Per-row VMEM footprint: 2x double-buffered input block (native dtype),
    # ~4x [TM, C]-sized f32-equivalent intermediates (upcast, shifted, exp,
    # one-hot select/mask), plus the lane-padded [TM, 1] int32 targets
    # (2 buffers x 128 lanes x 4 B).
    per_row_vmem = 2 * row_in_bytes + 4 * c * 4 + 2 * 128 * 4
    budget = int(vmem_limit * 0.6)
    rows_by_vmem = max(budget // per_row_vmem, gran)

    # DMA-size target: ~4 MiB per logits block keeps us near HBM roofline
    # without over-growing the working set when C is small.
    rows_by_bytes = max((4 * 1024 * 1024) // row_in_bytes, gran)

    tile = min(rows_by_vmem, rows_by_bytes)

    # Guarantee >= 2 blocks when the problem allows it, so the single
    # "parallel" axis actually splits across v7x's two TensorCores and the
    # DMA pipeline has steps to overlap.
    if m > gran:
        tile = min(tile, -(-m // 2))

    tile = max(gran, (tile // gran) * gran)
    m_rounded = -(-m // gran) * gran
    return int(min(tile, max(gran, m_rounded)))


@functools.partial(jax.jit, static_argnames=("tile_m",))
def _ce_pallas(logits2d, targets2d, tile_m):
    m, c = logits2d.shape
    num_blocks = -(-m // tile_m)
    itemsize = jnp.dtype(logits2d.dtype).itemsize
    vmem_limit = _vmem_limit_bytes()

    cost = pl.CostEstimate(
        flops=int(6 * m * c),
        transcendentals=int(m * c + m),
        bytes_accessed=int(m * c * itemsize + m * 4 + 2 * num_blocks * 8 * 4),
    )

    kernel = functools.partial(_ce_partial_kernel, num_rows=m)

    return pl.pallas_call(
        kernel,
        out_shape=(
            jax.ShapeDtypeStruct((num_blocks, 8, 1), jnp.float32),
            jax.ShapeDtypeStruct((num_blocks, 8, 1), jnp.float32),
        ),
        grid=(num_blocks,),
        in_specs=[
            pl.BlockSpec((tile_m, c), lambda i: (i, 0)),
            pl.BlockSpec((tile_m, 1), lambda i: (i, 0)),
        ],
        out_specs=(
            pl.BlockSpec((1, 8, 1), lambda i: (i, 0, 0)),
            pl.BlockSpec((1, 8, 1), lambda i: (i, 0, 0)),
        ),
        compiler_params=pltpu.CompilerParams(
            dimension_semantics=("parallel",),
            vmem_limit_bytes=vmem_limit,
        ),
        cost_estimate=cost,
    )(logits2d, targets2d)


def spin_attention_loss(predicts, batch, *, tile_m=None):
    """JAX/Pallas equivalent of SPINAttentionLoss.forward.

    predicts: [N, num_steps, num_classes] float logits (f32 or bf16).
    batch   : tuple/list; batch[1] is int labels [N, num_steps + 1]
              (batch[2] = label lengths is unused by the loss, as in PyTorch).
    Returns {'loss': scalar float32}.
    """
    labels = batch[1].astype(jnp.int32)
    targets = labels[:, 1:]                                   # drop BOS token
    n, num_steps, num_classes = predicts.shape
    assert targets.shape == (n, num_steps), (
        "The target's shape and inputs's shape is [N, d] and [N, num_steps]")

    logits2d = jnp.reshape(predicts, (-1, num_classes))       # [M, C]
    targets2d = jnp.reshape(targets, (-1, 1))                 # [M, 1]
    m = logits2d.shape[0]

    if tile_m is None:
        tile_m = _pick_tile_m(m, num_classes, logits2d.dtype,
                              _vmem_limit_bytes())

    sums, cnts = _ce_pallas(logits2d, targets2d, int(tile_m))  # 2 x [G, 8, 1]

    # reduction='mean' with ignore_index: sum of losses / #non-ignored rows.
    # (If every row is ignored this yields NaN, matching PyTorch CE.)
    loss = jnp.sum(sums[:, 0, 0]) / jnp.sum(cnts[:, 0, 0])
    return {'loss': loss}


def _reference_loss(predicts, batch):
    """Pure-JAX reference for verification (same semantics)."""
    labels = batch[1].astype(jnp.int32)
    targets = jnp.reshape(labels[:, 1:], (-1,))
    logits = jnp.reshape(predicts, (-1, predicts.shape[-1])).astype(jnp.float32)
    lse = jax.nn.logsumexp(logits, axis=-1)
    tgt_safe = jnp.where(targets == IGNORE_INDEX, 0, targets)
    tgt_logit = jnp.take_along_axis(logits, tgt_safe[:, None], axis=-1)[:, 0]
    valid = targets != IGNORE_INDEX
    per_row = jnp.where(valid, lse - tgt_logit, 0.0)
    return jnp.sum(per_row) / jnp.sum(valid.astype(jnp.float32))


if __name__ == "__main__":
    key = jax.random.PRNGKey(0)
    k1, k2 = jax.random.split(key)

    N, NUM_STEPS, NUM_CLASSES = 2, 8, 32
    predicts = jax.random.normal(k1, (N, NUM_STEPS, NUM_CLASSES),
                                 dtype=jnp.float32)
    # batch[1]: int labels [N, num_steps + 1]; sprinkle in ignore_index.
    labels = jax.random.randint(k2, (N, NUM_STEPS + 1), 0, NUM_CLASSES,
                                dtype=jnp.int32)
    labels = labels.at[0, -1].set(IGNORE_INDEX)
    labels = labels.at[1, -2].set(IGNORE_INDEX)
    label_lengths = jnp.array([NUM_STEPS, NUM_STEPS - 1], dtype=jnp.int32)
    batch = (None, labels, label_lengths)

    out = spin_attention_loss(predicts, batch)
    loss = jax.block_until_ready(out['loss'])

    ref = jax.block_until_ready(_reference_loss(predicts, batch))
    assert jnp.allclose(loss, ref, rtol=1e-5, atol=1e-5), (loss, ref)

    print("KERNEL_OK")
</pallas_src>

<mosaic_0001>
module attributes {stable_mosaic.version = 11 : i64} {
  func.func @_ce_partial_kernel(%arg0: i32, %arg1: memref<8x32xf32, #tpu.memory_space<vmem>>, %arg2: memref<8x1xi32, #tpu.memory_space<vmem>>, %arg3: memref<1x8x1xf32, #tpu.memory_space<vmem>>, %arg4: memref<1x8x1xf32, #tpu.memory_space<vmem>>) attributes {dimension_semantics = [#tpu.dimension_semantics<parallel>], iteration_bounds = array<i64: 2>, scalar_prefetch = 0 : i64, scratch_operands = 0 : i64, tpu.core_type = #tpu.core_type<tc>, window_params = [{transform_indices = @transform_0, window_bounds = array<i64: 8, 32>}, {transform_indices = @transform_1, window_bounds = array<i64: 8, 1>}, {transform_indices = @transform_2, window_bounds = array<i64: 1, 8, 1>}, {transform_indices = @transform_3, window_bounds = array<i64: 1, 8, 1>}]} {
    %c0 = arith.constant 0 : index
    %c0_0 = arith.constant 0 : index
    %0 = vector.load %arg1[%c0, %c0_0] : memref<8x32xf32, #tpu.memory_space<vmem>>, vector<8x32xf32>
    %c0_1 = arith.constant 0 : index
    %c0_2 = arith.constant 0 : index
    %1 = vector.load %arg2[%c0_1, %c0_2] : memref<8x1xi32, #tpu.memory_space<vmem>>, vector<8x1xi32>
    %cst = arith.constant dense<0xFF800000> : vector<8xf32>
    %2 = vector.multi_reduction <maximumf>, %0, %cst [1] : vector<8x32xf32> to vector<8xf32>
    %3 = vector.shape_cast %2 : vector<8xf32> to vector<8x1xf32>
    %4 = tpu.iota {dimensions = array<i32: 1>} : vector<1x32xi32>
    %5 = vector.broadcast %4 : vector<1x32xi32> to vector<8x32xi32>
    %6 = vector.broadcast %1 : vector<8x1xi32> to vector<8x32xi32>
    %7 = arith.cmpi eq, %5, %6 : vector<8x32xi32>
    %c0_i32 = arith.constant 0 : i32
    %8 = arith.sitofp %c0_i32 : i32 to f32
    %9 = vector.broadcast %8 : f32 to vector<8x32xf32>
    %10 = arith.select %7, %0, %9 : vector<8x32xi1>, vector<8x32xf32>
    %cst_3 = arith.constant dense<0.000000e+00> : vector<8xf32>
    %11 = vector.multi_reduction <add>, %10, %cst_3 [1] : vector<8x32xf32> to vector<8xf32>
    %12 = vector.shape_cast %11 : vector<8xf32> to vector<8x1xf32>
    %13 = vector.broadcast %3 : vector<8x1xf32> to vector<8x32xf32>
    %14 = arith.subf %0, %13 : vector<8x32xf32>
    %15 = math.exp %14 : vector<8x32xf32>
    %cst_4 = arith.constant dense<0.000000e+00> : vector<8xf32>
    %16 = vector.multi_reduction <add>, %15, %cst_4 [1] : vector<8x32xf32> to vector<8xf32>
    %17 = vector.shape_cast %16 : vector<8xf32> to vector<8x1xf32>
    %18 = math.log %17 : vector<8x1xf32>
    %19 = arith.addf %18, %3 : vector<8x1xf32>
    %20 = arith.subf %19, %12 : vector<8x1xf32>
    %21 = tpu.iota {dimensions = array<i32: 0>} : vector<8x1xi32>
    %c8_i32 = arith.constant 8 : i32
    %22 = arith.muli %arg0, %c8_i32 : i32
    %23 = vector.broadcast %22 : i32 to vector<8x1xi32>
    %24 = arith.addi %23, %21 : vector<8x1xi32>
    %c16_i32 = arith.constant 16 : i32
    %25 = vector.broadcast %c16_i32 : i32 to vector<8x1xi32>
    %26 = arith.cmpi slt, %24, %25 : vector<8x1xi32>
    %c-100_i32 = arith.constant -100 : i32
    %27 = vector.broadcast %c-100_i32 : i32 to vector<8x1xi32>
    %28 = arith.cmpi ne, %1, %27 : vector<8x1xi32>
    %29 = arith.andi %28, %26 : vector<8x1xi1>
    %cst_5 = arith.constant 0.000000e+00 : f32
    %30 = vector.broadcast %cst_5 : f32 to vector<8x1xf32>
    %31 = arith.select %29, %20, %30 : vector<8x1xi1>, vector<8x1xf32>
    %cst_6 = arith.constant dense<0.000000e+00> : vector<1xf32>
    %32 = vector.multi_reduction <add>, %31, %cst_6 [0] : vector<8x1xf32> to vector<1xf32>
    %33 = vector.shape_cast %32 : vector<1xf32> to vector<1x1xf32>
    %cst_7 = arith.constant 1.000000e+00 : f32
    %cst_8 = arith.constant 0.000000e+00 : f32
    %34 = vector.broadcast %cst_7 : f32 to vector<8x1xf32>
    %35 = vector.broadcast %cst_8 : f32 to vector<8x1xf32>
    %36 = arith.select %29, %34, %35 : vector<8x1xi1>, vector<8x1xf32>
    %cst_9 = arith.constant dense<0.000000e+00> : vector<1xf32>
    %37 = vector.multi_reduction <add>, %36, %cst_9 [0] : vector<8x1xf32> to vector<1xf32>
    %38 = vector.shape_cast %37 : vector<1xf32> to vector<1x1xf32>
    %39 = vector.shape_cast %33 : vector<1x1xf32> to vector<1x1x1xf32>
    %40 = vector.shape_cast %39 : vector<1x1x1xf32> to vector<1x1x1xf32>
    %41 = vector.broadcast %40 : vector<1x1x1xf32> to vector<1x8x1xf32>
    %c0_10 = arith.constant 0 : index
    %c0_11 = arith.constant 0 : index
    %c0_12 = arith.constant 0 : index
    %42 = vector.load %arg3[%c0_10, %c0_11, %c0_12] : memref<1x8x1xf32, #tpu.memory_space<vmem>>, vector<1x8x1xf32>
    tpu.vector_store %arg3[%c0_10, %c0_11, %c0_12], %41 {strides = array<i32>} : memref<1x8x1xf32, #tpu.memory_space<vmem>>, vector<1x8x1xf32>,
    %43 = vector.shape_cast %38 : vector<1x1xf32> to vector<1x1x1xf32>
    %44 = vector.shape_cast %43 : vector<1x1x1xf32> to vector<1x1x1xf32>
    %45 = vector.broadcast %44 : vector<1x1x1xf32> to vector<1x8x1xf32>
    %c0_13 = arith.constant 0 : index
    %c0_14 = arith.constant 0 : index
    %c0_15 = arith.constant 0 : index
    %46 = vector.load %arg4[%c0_13, %c0_14, %c0_15] : memref<1x8x1xf32, #tpu.memory_space<vmem>>, vector<1x8x1xf32>
    tpu.vector_store %arg4[%c0_13, %c0_14, %c0_15], %45 {strides = array<i32>} : memref<1x8x1xf32, #tpu.memory_space<vmem>>, vector<1x8x1xf32>,
    return
  }
  func.func @transform_0(%arg0: i32) -> (i32, i32) {
    %c0_i32 = arith.constant 0 : i32
    %c0_i32_0 = arith.constant 0 : i32
    return %arg0, %c0_i32 : i32, i32
  }
  func.func @transform_1(%arg0: i32) -> (i32, i32) {
    %c0_i32 = arith.constant 0 : i32
    %c0_i32_0 = arith.constant 0 : i32
    return %arg0, %c0_i32 : i32, i32
  }
  func.func @transform_2(%arg0: i32) -> (i32, i32, i32) {
    %c0_i32 = arith.constant 0 : i32
    %c0_i32_0 = arith.constant 0 : i32
    %c0_i32_1 = arith.constant 0 : i32
    return %arg0, %c0_i32, %c0_i32_0 : i32, i32, i32
  }
  func.func @transform_3(%arg0: i32) -> (i32, i32, i32) {
    %c0_i32 = arith.constant 0 : i32
    %c0_i32_0 = arith.constant 0 : i32
    %c0_i32_1 = arith.constant 0 : i32
    return %arg0, %c0_i32, %c0_i32_0 : i32, i32, i32
  }
}

</mosaic_0001>

<llo_original>
// kernel: _ce_pallas.1
$region0: #{_ce_pallas.1}
  #allocation0 [shape = 'u32[]', space=smem, size = 0x4, offset = 0x4, fixed_abs, tag = 'smem constant byte address 0x4 - core index']
  #allocation1 [shape = 'u32[72,128]{1,0:T(1,128)}', space=vmem, size = 0x9000, scoped, tag = 'internal scratch']
  %s0 = inlined_call_operand.vmem [shape: f32[16,32], index: 0, kind: input, shape index: {}]
  %s1 = inlined_call_operand.vmem [shape: s32[16,1], index: 1, kind: input, shape index: {}]
  %s2 = inlined_call_operand.vmem [shape: f32[2,8,1], index: 2, kind: output, shape index: {0}]
  %s3 = inlined_call_operand.vmem [shape: f32[2,8,1], index: 3, kind: output, shape index: {1}]
  %4 = xla_tuple %s2, %s3
  %s5 = sld [smem:[#allocation0]]
  $region49: #{_ce_pallas.1} parent=0
    _
  %s7 = ssub.s32 1, %s5
  %s8 = scalar_select 0, %s7, %s5
  loop: start=0, step=1, limit=4
  $region2: #{_ce_pallas.1} parent=0 // loop_pre_header
    _
  $region3: #{_ce_pallas.1} parent=0 // loop_header
    %s10 = sphi 0, %s14
    %p11 = scmp.ge.s32.totalorder %s10, 4
    %s20 = sphi 0, %s22
    %s23 = sphi 0, %s20
    %s24 = sphi 0, %s23
    %s40 = sphi 0, %s24
    %s46 = sphi 0, %s48
    %s49 = sphi 0, %s46
    %s50 = sphi 0, %s49
    %s66 = sphi 0, %s50
    %s72 = sphi 0, %s74
    %s75 = sphi 0, %s72
    %s76 = sphi 0, %s75
    %s92 = sphi 0, %s76
    %s98 = sphi 0, %s100
    %s101 = sphi 0, %s98
    %s102 = sphi 0, %s101
    %s118 = sphi 0, %s102
  $region4: #{_ce_pallas.1} parent=0 // loop_header_branch
    %13 = sbr.rel (%p11) target = $region8
  $region5: #{_ce_pallas.1} parent=0 // loop_body
    %s15 = ssub.s32 %s10, 1
    %s16 = ssub.s32 %s10, 2
    %s17 = sadd.s32 %s10, 1
    %s18 = ssub.s32 %s10, %s17
    %p19 = scmp.eq.s32.totalorder %s18, 0
    %s21 = sadd.s32 %s20, 1
    %s22 = scalar_select %p19, %s20, %s21
    %p25 = pneg %p19
    %p26 = scmp.eq.s32.totalorder %s10, 1
    %p27 = por %p25, %p26
    %p28 = scmp.ne.s32.totalorder %s20, %s23
    %p29 = scmp.eq.s32.totalorder %s10, 0
    %p30 = por %p28, %p29
    %p31 = scmp.ne.s32.totalorder %s20, %s23
    %p32 = scmp.eq.s32.totalorder %s15, 1
    %p33 = por %p31, %p32
    %p34 = scmp.ne.s32.totalorder %s23, %s24
    %p35 = scmp.eq.s32.totalorder %s15, 0
    %p36 = por %p34, %p35
    %p37 = scmp.ne.s32.totalorder %s23, %s24
    %p38 = scmp.eq.s32.totalorder %s16, 1
    %p39 = por %p37, %p38
    %p41 = scmp.ne.s32.totalorder %s24, %s40
    %p42 = scmp.eq.s32.totalorder %s16, 0
    %p43 = por %p41, %p42
    %s44 = ssub.s32 %s10, %s17
    %p45 = scmp.eq.s32.totalorder %s44, 0
    %s47 = sadd.s32 %s46, 1
    %s48 = scalar_select %p45, %s46, %s47
    %p51 = pneg %p45
    %p52 = scmp.eq.s32.totalorder %s10, 1
    %p53 = por %p51, %p52
    %p54 = scmp.ne.s32.totalorder %s46, %s49
    %p55 = scmp.eq.s32.totalorder %s10, 0
    %p56 = por %p54, %p55
    %p57 = scmp.ne.s32.totalorder %s46, %s49
    %p58 = scmp.eq.s32.totalorder %s15, 1
    %p59 = por %p57, %p58
    %p60 = scmp.ne.s32.totalorder %s49, %s50
    %p61 = scmp.eq.s32.totalorder %s15, 0
    %p62 = por %p60, %p61
    %p63 = scmp.ne.s32.totalorder %s49, %s50
    %p64 = scmp.eq.s32.totalorder %s16, 1
    %p65 = por %p63, %p64
    %p67 = scmp.ne.s32.totalorder %s50, %s66
    %p68 = scmp.eq.s32.totalorder %s16, 0
    %p69 = por %p67, %p68
    %s70 = ssub.s32 %s10, %s17
    %p71 = scmp.eq.s32.totalorder %s70, 0
    %s73 = sadd.s32 %s72, 1
    %s74 = scalar_select %p71, %s72, %s73
    %p77 = pneg %p71
    %p78 = scmp.eq.s32.totalorder %s10, 1
    %p79 = por %p77, %p78
    %p80 = scmp.ne.s32.totalorder %s72, %s75
    %p81 = scmp.eq.s32.totalorder %s10, 0
    %p82 = por %p80, %p81
    %p83 = scmp.ne.s32.totalorder %s72, %s75
    %p84 = scmp.eq.s32.totalorder %s15, 1
    %p85 = por %p83, %p84
    %p86 = scmp.ne.s32.totalorder %s75, %s76
    %p87 = scmp.eq.s32.totalorder %s15, 0
    %p88 = por %p86, %p87
    %p89 = scmp.ne.s32.totalorder %s75, %s76
    %p90 = scmp.eq.s32.totalorder %s16, 1
    %p91 = por %p89, %p90
    %p93 = scmp.ne.s32.totalorder %s76, %s92
    %p94 = scmp.eq.s32.totalorder %s16, 0
    %p95 = por %p93, %p94
    %s96 = ssub.s32 %s10, %s17
    %p97 = scmp.eq.s32.totalorder %s96, 0
    %s99 = sadd.s32 %s98, 1
    %s100 = scalar_select %p97, %s98, %s99
    %p103 = pneg %p97
    %p104 = scmp.eq.s32.totalorder %s10, 1
    %p105 = por %p103, %p104
    %p106 = scmp.ne.s32.totalorder %s98, %s101
    %p107 = scmp.eq.s32.totalorder %s10, 0
    %p108 = por %p106, %p107
    %p109 = scmp.ne.s32.totalorder %s98, %s101
    %p110 = scmp.eq.s32.totalorder %s15, 1
    %p111 = por %p109, %p110
    %p112 = scmp.ne.s32.totalorder %s101, %s102
    %p113 = scmp.eq.s32.totalorder %s15, 0
    %p114 = por %p112, %p113
    %p115 = scmp.ne.s32.totalorder %s101, %s102
    %p116 = scmp.eq.s32.totalorder %s16, 1
    %p117 = por %p115, %p116
    %p119 = scmp.ne.s32.totalorder %s102, %s118
    %p120 = scmp.eq.s32.totalorder %s16, 0
    %p121 = por %p119, %p120
    %p122 = scmp.le.s32.totalorder 1, %s10
    %p123 = scmp.lt.s32.totalorder %s10, 3
    %p124 = pnand %p122, %p123
    %p125 = pneg %p124
    // Predicated region
    $region9: #{_ce_pallas.1} parent=5 // pred_check
      _
    $region10: #{_ce_pallas.1} parent=5 // pred_check_branch
      %127 = sbr.rel (%p124) target = $region12
    $region11: #{_ce_pallas.1} parent=5 // pred_region
      %s128 = ssub.s32 %s10, 1
    $region12: #{_ce_pallas.1} parent=5 // pred_fallthru
      _
    %p129 = scmp.lt.s32.totalorder %s10, 2
    // Predicated region
    $region13: #{_ce_pallas.1} parent=5 // pred_check
      %p130 = pneg %p129
    $region14: #{_ce_pallas.1} parent=5 // pred_check_branch
      %132 = sbr.rel (%p130) target = $region16
    $region15: #{_ce_pallas.1} parent=5 // pred_region
      // Predicated region
      $region17: #{_ce_pallas.1} parent=15 // pred_check
        %p133 = pneg %p30
      $region18: #{_ce_pallas.1} parent=15 // pred_check_branch
        %135 = sbr.rel (%p133) target = $region20
      $region19: #{_ce_pallas.1} parent=15 // pred_region
        %p136 = scmp.lt.s32.totalorder %s10, 1
        %s137 = scalar_select %p136, %s10, 1
        %s138 = smul.addr %s137, 8
        %s139 = scalar_lea.vmem %s0, %s138
      $region20: #{_ce_pallas.1} parent=15 // pred_fallthru
        _
      // Predicated region
      $region21: #{_ce_pallas.1} parent=15 // pred_check
        %p140 = pneg %p56
      $region22: #{_ce_pallas.1} parent=15 // pred_check_branch
        %142 = sbr.rel (%p140) target = $region24
      $region23: #{_ce_pallas.1} parent=15 // pred_region
        %p143 = scmp.lt.s32.totalorder %s10, 1
        %s144 = scalar_select %p143, %s10, 1
        %s145 = smul.addr %s144, 8
        %s146 = scalar_lea.vmem %s1, %s145
      $region24: #{_ce_pallas.1} parent=15 // pred_fallthru
        _
    $region16: #{_ce_pallas.1} parent=5 // pred_fallthru
      _
    %p147 = scmp.le.s32.totalorder 1, %s10
    %p148 = scmp.lt.s32.totalorder %s10, 3
    %p149 = pnand %p147, %p148
    %p150 = pneg %p149
    // Predicated region
    $region25: #{_ce_pallas.1} parent=5 // pred_check
      _
    $region26: #{_ce_pallas.1} parent=5 // pred_check_branch
      %152 = sbr.rel (%p149) target = $region28
    $region27: #{_ce_pallas.1} parent=5 // pred_region
      %s153 = ssub.s32 %s10, 1
      %p154 = scmp.lt.s32.totalorder %s15, 1
      %s155 = scalar_select %p154, %s15, 1
      %s156 = smul.addr %s155, 8
      %s157 = scalar_lea.vmem %s0, %s156
      %p158 = pneg %p36
      %p159 = pneg %p33
      %p160 = scmp.lt.s32.totalorder %s15, 1
      %s161 = scalar_select %p160, %s15, 1
      %s162 = smul.addr %s161, 8
      %s163 = scalar_lea.vmem %s1, %s162
      %p164 = pneg %p62
      %p165 = pneg %p59
      %p166 = pneg %p88
      %p167 = pneg %p85
      %p168 = scmp.lt.s32.totalorder %s15, 1
      %s169 = scalar_select %p168, %s15, 1
      %s170 = smul.addr %s169, 8
      %s171 = scalar_lea.vmem %s2, %s170
      %p172 = pneg %p114
      %p173 = pneg %p111
      %p174 = scmp.lt.s32.totalorder %s15, 1
      %s175 = scalar_select %p174, %s15, 1
      %s176 = smul.addr %s175, 8
      %s177 = scalar_lea.vmem %s3, %s176
      %p178 = scmp.lt.s32.totalorder %s15, 1
      %s179 = scalar_select %p178, %s15, 1
      %s180 = smul.addr %s179, 8
      %s181 = scalar_lea.vmem %s0, %s180
      %p182 = scmp.lt.s32.totalorder %s15, 1
      %s183 = scalar_select %p182, %s15, 1
      %s184 = smul.addr %s183, 8
      %s185 = scalar_lea.vmem %s1, %s184
      %p186 = scmp.lt.s32.totalorder %s15, 1
      %s187 = scalar_select %p186, %s15, 1
      %s188 = smul.addr %s187, 8
      %s189 = scalar_lea.vmem %s2, %s188
      %p190 = scmp.lt.s32.totalorder %s15, 1
      %s191 = scalar_select %p190, %s15, 1
      %s192 = smul.addr %s191, 8
      %s193 = scalar_lea.vmem %s3, %s192
      %v194 = vld [vmem:[%s181] sm:$0xff]
      %v195 = vld [vmem:[%s185] sm:$0xff]
      %vm196 = vcmask 261120
      %v197 = vsel %vm196, %v194, -inf
      %198 = vmax.xlane.f32.xlu0 %v197
      %v199 = vpop.xlane.xlu0 %198
      %v200 = vlaneseq
      %v201 = vand.u32 %v200, 127
      %202 = vset.pattern.permute.xlu0 0
      %203 = vperm.xlu0 %202, %v195
      %v204 = vpop.permute.xlu0 %203
      %vm205 = vcmp.eq.s32.totalorder %v201, %v204
      %v206 = vsel %vm205, %v194, 0.0
      %v207 = vsel %vm196, %v206, 0.0
      %208 = vadd.xlane.f32.xlu0 %v207
      %v209 = vpop.xlane.xlu0 %208
      %v210 = vsub.f32 %v194, %v199
      %v211 = vmul.f32 %v210, 1.442695
      %v212 = vpow.pop %v211
      %v213 = vsel %vm196, %v212, 0.0
      %214 = vadd.xlane.f32.xlu0 %v213
      %v215 = vpop.xlane.xlu0 %214
      %v216 = vlog2.pop %v215
      %v217 = vmul.f32 %v216, 0.6931472
      %v218 = vadd.f32 %v217, %v199
      %v219 = vsub.f32 %v218, %v209
      %v220 = vlaneseq
      %v221 = vshrl.u32 %v220, 7
      %s222 = smul.u32 %s15, 8
      %v223 = vstv %s222
      %v224 = vadd.s32 %v223, %v221
      %vm225 = vcmp.lt.s32.totalorder %v224, 16
      %vm226 = vcmp.ne.s32.totalorder %v195, 4294967196
      %vm227 = vmand %vm226, %vm225
      %v228 = vsel %vm227, %v219, 0.0
      %vm229 = vcmask 7168
      %v230 = vsel %vm229, %v228, 0.0
      %v231 = vrot.slane %v230, 4
      %v232 = vadd.f32 %v230, %v231
      %v233 = vrot.slane %v232, 2
      %v234 = vadd.f32 %v232, %v233
      %v235 = vrot.slane %v234, 1
      %v236 = vadd.f32 %v234, %v235
      %v237 = vsel %vm227, 1.0, 0.0
      %v238 = vsel %vm229, %v237, 0.0
      %v239 = vrot.slane %v238, 4
      %v240 = vadd.f32 %v238, %v239
      %v241 = vrot.slane %v240, 2
      %v242 = vadd.f32 %v240, %v241
      %v243 = vrot.slane %v242, 1
      %v244 = vadd.f32 %v242, %v243
      %245 = vst.msk [vmem:[%s189] sm:$0xff] %vm229, %v236
      %246 = vst.msk [vmem:[%s193] sm:$0xff] %vm229, %v244
      %p247 = scmp.lt.s32.totalorder %s15, 1
      %s248 = scalar_select %p247, %s15, 1
      %s249 = smul.addr %s248, 8
      %s250 = scalar_lea.vmem %s2, %s249
      %p251 = scmp.lt.s32.totalorder %s15, 1
      %s252 = scalar_select %p251, %s15, 1
      %s253 = smul.addr %s252, 8
      %s254 = scalar_lea.vmem %s3, %s253
      // Predicated region
      $region29: #{_ce_pallas.1} parent=27 // pred_check
        %p255 = pneg %p85
      $region30: #{_ce_pallas.1} parent=27 // pred_check_branch
        %257 = sbr.rel (%p255) target = $region32
      $region31: #{_ce_pallas.1} parent=27 // pred_region
        _
      $region32: #{_ce_pallas.1} parent=27 // pred_fallthru
        _
      // Predicated region
      $region33: #{_ce_pallas.1} parent=27 // pred_check
        %p258 = pneg %p111
      $region34: #{_ce_pallas.1} parent=27 // pred_check_branch
        %260 = sbr.rel (%p258) target = $region36
      $region35: #{_ce_pallas.1} parent=27 // pred_region
        _
      $region36: #{_ce_pallas.1} parent=27 // pred_fallthru
        _
    $region28: #{_ce_pallas.1} parent=5 // pred_fallthru
      _
    %p261 = scmp.le.s32.totalorder 2, %s10
    // Predicated region
    $region37: #{_ce_pallas.1} parent=5 // pred_check
      %p262 = pneg %p261
    $region38: #{_ce_pallas.1} parent=5 // pred_check_branch
      %264 = sbr.rel (%p262) target = $region40
    $region39: #{_ce_pallas.1} parent=5 // pred_region
      %s265 = ssub.s32 %s10, 2
      // Predicated region
      $region41: #{_ce_pallas.1} parent=39 // pred_check
        %p266 = pneg %p91
      $region42: #{_ce_pallas.1} parent=39 // pred_check_branch
        %268 = sbr.rel (%p266) target = $region44
      $region43: #{_ce_pallas.1} parent=39 // pred_region
        %p269 = scmp.lt.s32.totalorder %s16, 1
        %s270 = scalar_select %p269, %s16, 1
        %s271 = smul.addr %s270, 8
        %s272 = scalar_lea.vmem %s2, %s271
      $region44: #{_ce_pallas.1} parent=39 // pred_fallthru
        _
      // Predicated region
      $region45: #{_ce_pallas.1} parent=39 // pred_check
        %p273 = pneg %p117
      $region46: #{_ce_pallas.1} parent=39 // pred_check_branch
        %275 = sbr.rel (%p273) target = $region48
      $region47: #{_ce_pallas.1} parent=39 // pred_region
        %p276 = scmp.lt.s32.totalorder %s16, 1
        %s277 = scalar_select %p276, %s16, 1
        %s278 = smul.addr %s277, 8
        %s279 = scalar_lea.vmem %s3, %s278
      $region48: #{_ce_pallas.1} parent=39 // pred_fallthru
        _
    $region40: #{_ce_pallas.1} parent=5 // pred_fallthru
      _
  $region6: #{_ce_pallas.1} parent=0 // loop_footer
    %s14 = sadd.s32 1, %s10
  $region7: #{_ce_pallas.1} parent=0 // loop_footer_branch
    %9 = sbr.rel target = $region3
  $region8: #{_ce_pallas.1} parent=0 // loop_exit
    _

</llo_original>
